<compile_context>
chip_gen: v7x
topology: tpu7x:2x2x1
jax: 0.10.0
libtpu: 0.0.40
codegen_flags: <defaults>
</compile_context>

<pallas_src>
import functools

import jax
import jax.numpy as jnp
from jax.experimental import pallas as pl
from jax.experimental.pallas import tpu as pltpu


def _round_up(x, m):
    return ((x + m - 1) // m) * m


def _conv1d_same_kernel(xa_ref, xb_ref, w_ref, b_ref, o_ref, *, nq, tl, ck, halo):
    """One (batch, group, L-tile) per grid step.

    xa_ref: (TL, CK)            main input tile, space-to-depth layout (CK = stride*cin_g)
    xb_ref: (TLB, CK)           halo rows from the next tile (unused if halo == 0)
    w_ref : (NQ*CK, COUT_PAD)   im2col-ordered weights for this group (zero-padded taps/channels)
    b_ref : (1, COUT_PAD)       bias for this group (zero-padded channels)
    o_ref : (TL, COUT_PAD)      output tile (lane-dense, COUT_PAD % 128 == 0)
    """
    if halo > 0:
        x_all = jnp.concatenate([xa_ref[...], xb_ref[...]], axis=0)  # (TL+TLB, CK)
    else:
        x_all = xa_ref[...]                                          # (TL, CK)
    w = w_ref[...]                                                   # (NQ*CK, COUT_PAD)

    if nq == 1:
        acc = jnp.dot(x_all[:tl], w, preferred_element_type=jnp.float32)
    elif ck < 128:
        # Small per-tap contraction: im2col all tap-groups into one wide matmul
        # so the MXU contraction dim is NQ*CK instead of CK.
        cols = jnp.concatenate([x_all[q:q + tl, :] for q in range(nq)], axis=1)
        acc = jnp.dot(cols, w, preferred_element_type=jnp.float32)
    else:
        # Contraction per tap-group already fills the MXU: accumulate NQ matmuls,
        # each a unit-stride row window (no im2col copies).
        acc = jnp.zeros((tl, w.shape[-1]), jnp.float32)
        for q in range(nq):
            acc = acc + jnp.dot(x_all[q:q + tl, :], w[q * ck:(q + 1) * ck, :],
                                preferred_element_type=jnp.float32)

    o_ref[...] = (acc + b_ref[...].astype(jnp.float32)).astype(o_ref.dtype)


def my_conv1d_pad_same(x, weight, bias, *, stride, groups=1, block_l=256):
    """x: (N, C_in, L) like PyTorch NCL; weight: (C_out, C_in//groups, K); bias: (C_out,)."""
    n, c_in, in_dim = x.shape
    c_out, cin_g, k = weight.shape
    assert c_in == cin_g * groups and c_out % groups == 0
    cout_g = c_out // groups

    # SAME padding exactly as in the PyTorch module.
    out_dim = -(-in_dim // stride)
    p = max(0, (out_dim - 1) * stride + k - in_dim)
    pad_left = p // 2

    # Tiling / layout parameters.
    nq = -(-k // stride)                       # tap-groups per output row (s2d space)
    k_pad = nq * stride                        # taps zero-padded to a multiple of stride
    halo = nq - 1                              # extra s2d rows needed past each L tile
    tlb = _round_up(max(halo, 1), 8)           # halo block rows (sublane aligned)
    tl = min(_round_up(out_dim, tlb), _round_up(block_l, tlb))  # output rows per tile
    num_t = -(-out_dim // tl)
    out_dim_pad = num_t * tl
    ls_pad = (num_t + 1) * tl                  # s2d rows incl. halo slack; % tl == % tlb == 0
    l_total = ls_pad * stride                  # zero-padded signal length
    ck = stride * cin_g                        # per-group contraction per tap-group
    cout_pad = _round_up(cout_g, 128)          # lane-dense output channels

    # ---- input: NCL -> space-to-depth (N, G, Ls, stride*cin_g), zero padded.
    x_nlc = jnp.transpose(x, (0, 2, 1))
    x_padded = jnp.pad(
        x_nlc, ((0, 0), (pad_left, l_total - in_dim - pad_left), (0, 0)))
    x_s2d = x_padded.reshape(n, ls_pad, stride, groups, cin_g)
    x_s2d = jnp.transpose(x_s2d, (0, 3, 1, 2, 4)).reshape(n, groups, ls_pad, ck)

    # ---- weights: (C_out, cin_g, K) -> (G, NQ*stride*cin_g, cout_pad), im2col order.
    w = jnp.pad(weight, ((0, 0), (0, 0), (0, k_pad - k)))      # zero the extra taps
    w = w.reshape(groups, cout_g, cin_g, nq, stride)
    w = jnp.transpose(w, (0, 3, 4, 2, 1)).reshape(groups, nq * ck, cout_g)
    w = jnp.pad(w, ((0, 0), (0, 0), (0, cout_pad - cout_g)))

    b = jnp.pad(bias.reshape(groups, 1, cout_g),
                ((0, 0), (0, 0), (0, cout_pad - cout_g)))

    kernel = functools.partial(_conv1d_same_kernel, nq=nq, tl=tl, ck=ck, halo=halo)

    bpe = x.dtype.itemsize
    cost = pl.CostEstimate(
        flops=2 * n * out_dim * k_pad * cin_g * c_out,
        transcendentals=0,
        bytes_accessed=(x_s2d.size + w.size + b.size) * bpe
        + n * groups * out_dim_pad * cout_pad * bpe)

    out = pl.pallas_call(
        kernel,
        out_shape=jax.ShapeDtypeStruct((n, groups, out_dim_pad, cout_pad), x.dtype),
        grid_spec=pltpu.PrefetchScalarGridSpec(
            num_scalar_prefetch=0,
            grid=(n, groups, num_t),
            in_specs=[
                # main input tile
                pl.BlockSpec((None, None, tl, ck),
                             lambda i, g, t: (i, g, t, 0)),
                # halo rows just past the tile (same array, small blocks)
                pl.BlockSpec((None, None, tlb, ck),
                             lambda i, g, t: (i, g, (t + 1) * (tl // tlb), 0)),
                # per-group weights / bias
                pl.BlockSpec((None, nq * ck, cout_pad),
                             lambda i, g, t: (g, 0, 0)),
                pl.BlockSpec((None, 1, cout_pad),
                             lambda i, g, t: (g, 0, 0)),
            ],
            out_specs=pl.BlockSpec((None, None, tl, cout_pad),
                                   lambda i, g, t: (i, g, t, 0)),
        ),
        compiler_params=pltpu.CompilerParams(
            dimension_semantics=("parallel", "parallel", "parallel"),
            vmem_limit_bytes=48 * 1024 * 1024),
        cost_estimate=cost,
    )(x_s2d, x_s2d, w, b)

    out = out[:, :, :out_dim, :cout_g]                 # drop tile / lane padding
    out = jnp.transpose(out, (0, 1, 3, 2)).reshape(n, c_out, out_dim)
    return out


def _reference(x, weight, bias, *, stride, groups=1):
    """Pure-JAX reference matching the PyTorch module semantics (f32-accurate)."""
    in_dim = x.shape[-1]
    k = weight.shape[-1]
    out_dim = -(-in_dim // stride)
    p = max(0, (out_dim - 1) * stride + k - in_dim)
    pad_left = p // 2
    pad_right = p - pad_left
    out = jax.lax.conv_general_dilated(
        x, weight, window_strides=(stride,), padding=[(pad_left, pad_right)],
        dimension_numbers=("NCH", "OIH", "NCH"), feature_group_count=groups,
        precision=jax.lax.Precision.HIGHEST)
    return out + bias[None, :, None]


if __name__ == "__main__":
    configs = [
        # (n, c_in, c_out, length, kernel_size, stride, groups)
        (2, 4, 8, 16, 3, 2, 1),      # base example
        (2, 4, 8, 16, 5, 1, 2),      # grouped, stride 1
        (1, 1, 8, 37, 16, 4, 1),     # resnet1d-style first layer, ragged length
        (1, 64, 64, 64, 3, 2, 1),    # exercises the wide-contraction path (ck >= 128)
    ]
    key = jax.random.PRNGKey(0)
    for idx, (n, c_in, c_out, length, ksz, stride, groups) in enumerate(configs):
        key, kx, kw, kb = jax.random.split(key, 4)
        x = jax.random.normal(kx, (n, c_in, length), dtype=jnp.float32)
        fan_in = (c_in // groups) * ksz
        bound = 1.0 / (fan_in ** 0.5)
        weight = jax.random.uniform(kw, (c_out, c_in // groups, ksz),
                                    minval=-bound, maxval=bound, dtype=jnp.float32)
        bias = jax.random.uniform(kb, (c_out,), minval=-bound, maxval=bound,
                                  dtype=jnp.float32)

        out = my_conv1d_pad_same(x, weight, bias, stride=stride, groups=groups)
        out = jax.block_until_ready(out)

        ref = _reference(x, weight, bias, stride=stride, groups=groups)
        out_dim = (length + stride - 1) // stride
        assert out.shape == (n, c_out, out_dim), (idx, out.shape)
        # Loose-ish tolerance: f32 matmuls may be evaluated with bf16 MXU passes
        # depending on the platform's default matmul precision.
        err = float(jnp.max(jnp.abs(out - ref)))
        assert jnp.allclose(out, ref, atol=3e-2, rtol=3e-2), (idx, err)
    print("KERNEL_OK")
</pallas_src>

<mosaic_0001>
module attributes {stable_mosaic.version = 11 : i64} {
  func.func @_conv1d_same_kernel(%arg0: i32, %arg1: i32, %arg2: i32, %arg3: memref<1x1x8x8xf32, #tpu.memory_space<vmem>>, %arg4: memref<1x1x8x8xf32, #tpu.memory_space<vmem>>, %arg5: memref<1x16x128xf32, #tpu.memory_space<vmem>>, %arg6: memref<1x1x128xf32, #tpu.memory_space<vmem>>, %arg7: memref<1x1x8x128xf32, #tpu.memory_space<vmem>>) attributes {dimension_semantics = [#tpu.dimension_semantics<parallel>, #tpu.dimension_semantics<parallel>, #tpu.dimension_semantics<parallel>], iteration_bounds = array<i64: 2, 1, 1>, scalar_prefetch = 0 : i64, scratch_operands = 0 : i64, tpu.core_type = #tpu.core_type<tc>, window_params = [{transform_indices = @transform_0, window_bounds = array<i64: 1, 1, 8, 8>}, {transform_indices = @transform_1, window_bounds = array<i64: 1, 1, 8, 8>}, {transform_indices = @transform_2, window_bounds = array<i64: 1, 16, 128>}, {transform_indices = @transform_3, window_bounds = array<i64: 1, 1, 128>}, {transform_indices = @transform_4, window_bounds = array<i64: 1, 1, 8, 128>}]} {
    %c0 = arith.constant 0 : index
    %c0_0 = arith.constant 0 : index
    %c0_1 = arith.constant 0 : index
    %c0_2 = arith.constant 0 : index
    %0 = vector.load %arg3[%c0, %c0_0, %c0_1, %c0_2] : memref<1x1x8x8xf32, #tpu.memory_space<vmem>>, vector<1x1x8x8xf32>
    %1 = vector.shape_cast %0 : vector<1x1x8x8xf32> to vector<8x8xf32>
    %c0_3 = arith.constant 0 : index
    %c0_4 = arith.constant 0 : index
    %c0_5 = arith.constant 0 : index
    %c0_6 = arith.constant 0 : index
    %2 = vector.load %arg4[%c0_3, %c0_4, %c0_5, %c0_6] : memref<1x1x8x8xf32, #tpu.memory_space<vmem>>, vector<1x1x8x8xf32>
    %3 = vector.shape_cast %2 : vector<1x1x8x8xf32> to vector<8x8xf32>
    %4 = tpu.concatenate %1, %3 in 0 : vector<8x8xf32>, vector<8x8xf32> -> vector<16x8xf32>
    %c0_7 = arith.constant 0 : index
    %c0_8 = arith.constant 0 : index
    %c0_9 = arith.constant 0 : index
    %5 = vector.load %arg5[%c0_7, %c0_8, %c0_9] : memref<1x16x128xf32, #tpu.memory_space<vmem>>, vector<1x16x128xf32>
    %6 = vector.shape_cast %5 : vector<1x16x128xf32> to vector<16x128xf32>
    %7 = vector.extract_strided_slice %4 {offsets = [0, 0], sizes = [8, 8], strides = [1, 1]} : vector<16x8xf32> to vector<8x8xf32>
    %8 = vector.extract_strided_slice %4 {offsets = [1, 0], sizes = [8, 8], strides = [1, 1]} : vector<16x8xf32> to vector<8x8xf32>
    %9 = tpu.concatenate %7, %8 in 1 : vector<8x8xf32>, vector<8x8xf32> -> vector<8x16xf32>
    %cst = arith.constant dense<0.000000e+00> : vector<8x128xf32>
    %10 = tpu.matmul %9, %6, %cst {dimension_numbers = #tpu.dot_dimension_numbers<[1], [0], [0], [1], [0, 0, 1, 1], [], []>} : vector<8x16xf32>, vector<16x128xf32>, vector<8x128xf32> -> vector<8x128xf32>
    %c0_10 = arith.constant 0 : index
    %c0_11 = arith.constant 0 : index
    %c0_12 = arith.constant 0 : index
    %11 = vector.load %arg6[%c0_10, %c0_11, %c0_12] : memref<1x1x128xf32, #tpu.memory_space<vmem>>, vector<1x1x128xf32>
    %12 = vector.shape_cast %11 : vector<1x1x128xf32> to vector<1x128xf32>
    %13 = vector.broadcast %12 : vector<1x128xf32> to vector<8x128xf32>
    %14 = arith.addf %10, %13 : vector<8x128xf32>
    %c0_13 = arith.constant 0 : index
    %c0_14 = arith.constant 0 : index
    %c0_15 = arith.constant 0 : index
    %c0_16 = arith.constant 0 : index
    %15 = vector.load %arg7[%c0_13, %c0_14, %c0_15, %c0_16] : memref<1x1x8x128xf32, #tpu.memory_space<vmem>>, vector<1x1x8x128xf32>
    %16 = vector.shape_cast %15 : vector<1x1x8x128xf32> to vector<8x128xf32>
    %17 = vector.shape_cast %14 : vector<8x128xf32> to vector<1x1x8x128xf32>
    tpu.vector_store %arg7[%c0_13, %c0_14, %c0_15, %c0_16], %17 {strides = array<i32>} : memref<1x1x8x128xf32, #tpu.memory_space<vmem>>, vector<1x1x8x128xf32>,
    return
  }
  func.func @transform_0(%arg0: i32, %arg1: i32, %arg2: i32) -> (i32, i32, i32, i32) {
    %c0_i32 = arith.constant 0 : i32
    %c0_i32_0 = arith.constant 0 : i32
    return %arg0, %arg1, %arg2, %c0_i32 : i32, i32, i32, i32
  }
  func.func @transform_1(%arg0: i32, %arg1: i32, %arg2: i32) -> (i32, i32, i32, i32) {
    %c1_i32 = arith.constant 1 : i32
    %0 = arith.addi %arg2, %c1_i32 : i32
    %c1_i32_0 = arith.constant 1 : i32
    %1 = arith.muli %0, %c1_i32_0 : i32
    %c0_i32 = arith.constant 0 : i32
    %c0_i32_1 = arith.constant 0 : i32
    return %arg0, %arg1, %1, %c0_i32 : i32, i32, i32, i32
  }
  func.func @transform_2(%arg0: i32, %arg1: i32, %arg2: i32) -> (i32, i32, i32) {
    %c0_i32 = arith.constant 0 : i32
    %c0_i32_0 = arith.constant 0 : i32
    %c0_i32_1 = arith.constant 0 : i32
    return %arg1, %c0_i32, %c0_i32_0 : i32, i32, i32
  }
  func.func @transform_3(%arg0: i32, %arg1: i32, %arg2: i32) -> (i32, i32, i32) {
    %c0_i32 = arith.constant 0 : i32
    %c0_i32_0 = arith.constant 0 : i32
    %c0_i32_1 = arith.constant 0 : i32
    return %arg1, %c0_i32, %c0_i32_0 : i32, i32, i32
  }
  func.func @transform_4(%arg0: i32, %arg1: i32, %arg2: i32) -> (i32, i32, i32, i32) {
    %c0_i32 = arith.constant 0 : i32
    %c0_i32_0 = arith.constant 0 : i32
    return %arg0, %arg1, %arg2, %c0_i32 : i32, i32, i32, i32
  }
}

</mosaic_0001>

<llo_original>
// kernel: tpu_custom_call.1
$region0: #{tpu_custom_call.1}
  #allocation0 [shape = 'u32[]', space=smem, size = 0x4, offset = 0x4, fixed_abs, tag = 'smem constant byte address 0x4 - core index']
  #allocation1 [shape = 'u32[144,128]{1,0:T(1,128)}', space=vmem, size = 0x12000, scoped, tag = 'internal scratch']
  %s0 = inlined_call_operand.vmem [shape: f32[2,1,16,8], index: 0, kind: input, shape index: {}]
  %s1 = inlined_call_operand.vmem [shape: f32[2,1,16,8], index: 1, kind: input, shape index: {}]
  %s2 = inlined_call_operand.vmem [shape: f32[1,16,128], index: 2, kind: input, shape index: {}]
  %s3 = inlined_call_operand.vmem [shape: f32[1,1,128], index: 3, kind: input, shape index: {}]
  %s4 = inlined_call_operand.hbm [shape: f32[2,1,8,128], index: 4, kind: output, shape index: {}]
  %s5 = sld [smem:[#allocation0]]
  $region49: #{tpu_custom_call.1} parent=0
    _
  %s7 = ssub.s32 1, %s5
  %s8 = scalar_select 0, %s7, %s5
  $region1: #{tpu_custom_call.1} parent=0
    #allocation2 [shape = 'u8[8192]{0}', space=vmem, size = 0x2000, scoped, tag = 'output window, operand 0']
    #allocation3 [shape = 's32[2]{0}', space=sflag, size = 0x8, scoped, tag = 'scoped memory for tpu_custom_call.1']
    %9 = vsyncpa [#allocation3], 0
    %s10 = scalar_lea.sflag [#allocation3], 1
    %11 = vsyncpa %s10, 0
    loop: start=0, step=1, limit=4
    $region2: #{tpu_custom_call.1} parent=1 // loop_pre_header
      _
    $region3: #{tpu_custom_call.1} parent=1 // loop_header
      %s13 = sphi 0, %s17
      %p14 = scmp.ge.s32.totalorder %s13, 4
      %s20 = sphi 0, %s39
      %s21 = sphi 0, %s35
      %s22 = sphi 0, %s31
      %s23 = sphi 0, %s20
      %s24 = sphi 0, %s21
      %s25 = sphi 0, %s22
      %s26 = sphi 0, %s23
      %s27 = sphi 0, %s24
      %s28 = sphi 0, %s25
      %s46 = sphi 0, %s48
      %s49 = sphi 0, %s46
      %s50 = sphi 0, %s49
      %s66 = sphi 0, %s50
      %s78 = sphi 0, %s80
      %s81 = sphi 0, %s78
      %s82 = sphi 0, %s81
      %s98 = sphi 0, %s82
      %s104 = sphi 0, %s106
      %s107 = sphi 0, %s104
      %s108 = sphi 0, %s107
      %s124 = sphi 0, %s108
      %s130 = sphi 0, %s132
      %s133 = sphi 0, %s130
      %s134 = sphi 0, %s133
      %s150 = sphi 0, %s134
      %s160 = sphi 0, %s162
      %s163 = sphi 0, %s160
      %s164 = sphi 0, %s163
      %s180 = sphi 0, %s164
    $region4: #{tpu_custom_call.1} parent=1 // loop_header_branch
      %16 = sbr.rel (%p14) target = $region8
    $region5: #{tpu_custom_call.1} parent=1 // loop_body
      %s18 = ssub.s32 %s13, 1
      %s19 = ssub.s32 %s13, 2
      %s29 = sadd.s32 1, %s22
      %p30 = scmp.ge.s32.totalorder %s29, 1
      %s31 = scalar_select %p30, 0, %s29
      %s32 = sadd.s32 1, %s21
      %s33 = scalar_select %p30, %s32, %s21
      %p34 = scmp.ge.s32.totalorder %s33, 1
      %s35 = scalar_select %p34, 0, %s33
      %s36 = sadd.s32 1, %s20
      %s37 = scalar_select %p34, %s36, %s20
      %p38 = scmp.ge.s32.totalorder %s37, 2
      %s39 = scalar_select %p38, 0, %s37
      %s40 = ssub.s32 %s20, %s39
      %s41 = ssub.s32 %s21, %s35
      %s42 = sor.u32 %s40, %s41
      %s43 = ssub.s32 %s22, %s31
      %s44 = sor.u32 %s42, %s43
      %p45 = scmp.eq.s32.totalorder %s44, 0
      %s47 = sadd.s32 %s46, 1
      %s48 = scalar_select %p45, %s46, %s47
      %p51 = pneg %p45
      %p52 = scmp.eq.s32.totalorder %s13, 1
      %p53 = por %p51, %p52
      %p54 = scmp.ne.s32.totalorder %s46, %s49
      %p55 = scmp.eq.s32.totalorder %s13, 0
      %p56 = por %p54, %p55
      %p57 = scmp.ne.s32.totalorder %s46, %s49
      %p58 = scmp.eq.s32.totalorder %s18, 1
      %p59 = por %p57, %p58
      %p60 = scmp.ne.s32.totalorder %s49, %s50
      %p61 = scmp.eq.s32.totalorder %s18, 0
      %p62 = por %p60, %p61
      %p63 = scmp.ne.s32.totalorder %s49, %s50
      %p64 = scmp.eq.s32.totalorder %s19, 1
      %p65 = por %p63, %p64
      %p67 = scmp.ne.s32.totalorder %s50, %s66
      %p68 = scmp.eq.s32.totalorder %s19, 0
      %p69 = por %p67, %p68
      %s70 = sadd.s32 %s22, 1
      %s71 = sadd.s32 %s31, 1
      %s72 = ssub.s32 %s20, %s39
      %s73 = ssub.s32 %s21, %s35
      %s74 = sor.u32 %s72, %s73
      %s75 = ssub.s32 %s70, %s71
      %s76 = sor.u32 %s74, %s75
      %p77 = scmp.eq.s32.totalorder %s76, 0
      %s79 = sadd.s32 %s78, 1
      %s80 = scalar_select %p77, %s78, %s79
      %p83 = pneg %p77
      %p84 = scmp.eq.s32.totalorder %s13, 1
      %p85 = por %p83, %p84
      %p86 = scmp.ne.s32.totalorder %s78, %s81
      %p87 = scmp.eq.s32.totalorder %s13, 0
      %p88 = por %p86, %p87
      %p89 = scmp.ne.s32.totalorder %s78, %s81
      %p90 = scmp.eq.s32.totalorder %s18, 1
      %p91 = por %p89, %p90
      %p92 = scmp.ne.s32.totalorder %s81, %s82
      %p93 = scmp.eq.s32.totalorder %s18, 0
      %p94 = por %p92, %p93
      %p95 = scmp.ne.s32.totalorder %s81, %s82
      %p96 = scmp.eq.s32.totalorder %s19, 1
      %p97 = por %p95, %p96
      %p99 = scmp.ne.s32.totalorder %s82, %s98
      %p100 = scmp.eq.s32.totalorder %s19, 0
      %p101 = por %p99, %p100
      %s102 = ssub.s32 %s21, %s35
      %p103 = scmp.eq.s32.totalorder %s102, 0
      %s105 = sadd.s32 %s104, 1
      %s106 = scalar_select %p103, %s104, %s105
      %p109 = pneg %p103
      %p110 = scmp.eq.s32.totalorder %s13, 1
      %p111 = por %p109, %p110
      %p112 = scmp.ne.s32.totalorder %s104, %s107
      %p113 = scmp.eq.s32.totalorder %s13, 0
      %p114 = por %p112, %p113
      %p115 = scmp.ne.s32.totalorder %s104, %s107
      %p116 = scmp.eq.s32.totalorder %s18, 1
      %p117 = por %p115, %p116
      %p118 = scmp.ne.s32.totalorder %s107, %s108
      %p119 = scmp.eq.s32.totalorder %s18, 0
      %p120 = por %p118, %p119
      %p121 = scmp.ne.s32.totalorder %s107, %s108
      %p122 = scmp.eq.s32.totalorder %s19, 1
      %p123 = por %p121, %p122
      %p125 = scmp.ne.s32.totalorder %s108, %s124
      %p126 = scmp.eq.s32.totalorder %s19, 0
      %p127 = por %p125, %p126
      %s128 = ssub.s32 %s21, %s35
      %p129 = scmp.eq.s32.totalorder %s128, 0
      %s131 = sadd.s32 %s130, 1
      %s132 = scalar_select %p129, %s130, %s131
      %p135 = pneg %p129
      %p136 = scmp.eq.s32.totalorder %s13, 1
      %p137 = por %p135, %p136
      %p138 = scmp.ne.s32.totalorder %s130, %s133
      %p139 = scmp.eq.s32.totalorder %s13, 0
      %p140 = por %p138, %p139
      %p141 = scmp.ne.s32.totalorder %s130, %s133
      %p142 = scmp.eq.s32.totalorder %s18, 1
      %p143 = por %p141, %p142
      %p144 = scmp.ne.s32.totalorder %s133, %s134
      %p145 = scmp.eq.s32.totalorder %s18, 0
      %p146 = por %p144, %p145
      %p147 = scmp.ne.s32.totalorder %s133, %s134
      %p148 = scmp.eq.s32.totalorder %s19, 1
      %p149 = por %p147, %p148
      %p151 = scmp.ne.s32.totalorder %s134, %s150
      %p152 = scmp.eq.s32.totalorder %s19, 0
      %p153 = por %p151, %p152
      %s154 = ssub.s32 %s20, %s39
      %s155 = ssub.s32 %s21, %s35
      %s156 = sor.u32 %s154, %s155
      %s157 = ssub.s32 %s22, %s31
      %s158 = sor.u32 %s156, %s157
      %p159 = scmp.eq.s32.totalorder %s158, 0
      %s161 = sadd.s32 %s160, 1
      %s162 = scalar_select %p159, %s160, %s161
      %p165 = pneg %p159
      %p166 = scmp.eq.s32.totalorder %s13, 1
      %p167 = por %p165, %p166
      %p168 = scmp.ne.s32.totalorder %s160, %s163
      %p169 = scmp.eq.s32.totalorder %s13, 0
      %p170 = por %p168, %p169
      %p171 = scmp.ne.s32.totalorder %s160, %s163
      %p172 = scmp.eq.s32.totalorder %s18, 1
      %p173 = por %p171, %p172
      %p174 = scmp.ne.s32.totalorder %s163, %s164
      %p175 = scmp.eq.s32.totalorder %s18, 0
      %p176 = por %p174, %p175
      %p177 = scmp.ne.s32.totalorder %s163, %s164
      %p178 = scmp.eq.s32.totalorder %s19, 1
      %p179 = por %p177, %p178
      %p181 = scmp.ne.s32.totalorder %s164, %s180
      %p182 = scmp.eq.s32.totalorder %s19, 0
      %p183 = por %p181, %p182
      %p184 = scmp.le.s32.totalorder 1, %s13
      %p185 = scmp.lt.s32.totalorder %s13, 3
      %p186 = pnand %p184, %p185
      %p187 = pneg %p186
      // Predicated region
      $region9: #{tpu_custom_call.1} parent=5 // pred_check
        _
      $region10: #{tpu_custom_call.1} parent=5 // pred_check_branch
        %189 = sbr.rel (%p186) target = $region12
      $region11: #{tpu_custom_call.1} parent=5 // pred_region
        %s190 = ssub.s32 %s13, 1
        // Predicated region
        $region13: #{tpu_custom_call.1} parent=11 // pred_check
          %p191 = pneg %p120
        $region14: #{tpu_custom_call.1} parent=11 // pred_check_branch
          %193 = sbr.rel (%p191) target = $region16
        $region15: #{tpu_custom_call.1} parent=11 // pred_region
          %p194 = scmp.lt.s32.totalorder %s24, 0
          %s195 = scalar_select %p194, %s24, 0
          %s196 = smul.addr %s195, 2
          %s197 = smul.addr %s196, 8
          %s198 = scalar_lea.vmem %s2, %s197
        $region16: #{tpu_custom_call.1} parent=11 // pred_fallthru
          _
        // Predicated region
        $region17: #{tpu_custom_call.1} parent=11 // pred_check
          %p199 = pneg %p146
        $region18: #{tpu_custom_call.1} parent=11 // pred_check_branch
          %201 = sbr.rel (%p199) target = $region20
        $region19: #{tpu_custom_call.1} parent=11 // pred_region
          %p202 = scmp.lt.s32.totalorder %s24, 0
          %s203 = scalar_select %p202, %s24, 0
          %s204 = scalar_lea.vmem %s3, %s203
        $region20: #{tpu_custom_call.1} parent=11 // pred_fallthru
          _
      $region12: #{tpu_custom_call.1} parent=5 // pred_fallthru
        _
      %p205 = scmp.lt.s32.totalorder %s13, 2
      // Predicated region
      $region21: #{tpu_custom_call.1} parent=5 // pred_check
        %p206 = pneg %p205
      $region22: #{tpu_custom_call.1} parent=5 // pred_check_branch
        %208 = sbr.rel (%p206) target = $region24
      $region23: #{tpu_custom_call.1} parent=5 // pred_region
        // Predicated region
        $region25: #{tpu_custom_call.1} parent=23 // pred_check
          %p209 = pneg %p56
        $region26: #{tpu_custom_call.1} parent=23 // pred_check_branch
          %211 = sbr.rel (%p209) target = $region28
        $region27: #{tpu_custom_call.1} parent=23 // pred_region
          %p212 = scmp.lt.s32.totalorder %s20, 1
          %s213 = scalar_select %p212, %s20, 1
          %p214 = scmp.lt.s32.totalorder %s21, 0
          %s215 = scalar_select %p214, %s21, 0
          %p216 = scmp.lt.s32.totalorder %s22, 1
          %s217 = scalar_select %p216, %s22, 1
          %s218 = smul.addr %s215, 2
          %s219 = sadd.s32 %s217, %s218
          %s220 = smul.addr %s213, 2
          %s221 = sadd.s32 %s219, %s220
          %s222 = smul.addr %s221, 8
          %s223 = scalar_lea.vmem %s0, %s222
        $region28: #{tpu_custom_call.1} parent=23 // pred_fallthru
          _
        // Predicated region
        $region29: #{tpu_custom_call.1} parent=23 // pred_check
          %p224 = pneg %p88
        $region30: #{tpu_custom_call.1} parent=23 // pred_check_branch
          %226 = sbr.rel (%p224) target = $region32
        $region31: #{tpu_custom_call.1} parent=23 // pred_region
          %s227 = sadd.s32 %s22, 1
          %p228 = scmp.lt.s32.totalorder %s20, 1
          %s229 = scalar_select %p228, %s20, 1
          %p230 = scmp.lt.s32.totalorder %s21, 0
          %s231 = scalar_select %p230, %s21, 0
          %p232 = scmp.lt.s32.totalorder %s227, 1
          %s233 = scalar_select %p232, %s227, 1
          %s234 = smul.addr %s231, 2
          %s235 = sadd.s32 %s233, %s234
          %s236 = smul.addr %s229, 2
          %s237 = sadd.s32 %s235, %s236
          %s238 = smul.addr %s237, 8
          %s239 = scalar_lea.vmem %s1, %s238
          %s240 = sadd.s32 %s22, 1
        $region32: #{tpu_custom_call.1} parent=23 // pred_fallthru
          _
      $region24: #{tpu_custom_call.1} parent=5 // pred_fallthru
        _
      %p241 = scmp.le.s32.totalorder 1, %s13
      %p242 = scmp.lt.s32.totalorder %s13, 3
      %p243 = pnand %p241, %p242
      %p244 = pneg %p243
      // Predicated region
      $region33: #{tpu_custom_call.1} parent=5 // pred_check
        _
      $region34: #{tpu_custom_call.1} parent=5 // pred_check_branch
        %246 = sbr.rel (%p243) target = $region36
      $region35: #{tpu_custom_call.1} parent=5 // pred_region
        %s247 = ssub.s32 %s13, 1
        %p248 = scmp.lt.s32.totalorder %s23, 1
        %s249 = scalar_select %p248, %s23, 1
        %p250 = scmp.lt.s32.totalorder %s24, 0
        %s251 = scalar_select %p250, %s24, 0
        %p252 = scmp.lt.s32.totalorder %s25, 1
        %s253 = scalar_select %p252, %s25, 1
        %s254 = smul.addr %s251, 2
        %s255 = sadd.s32 %s253, %s254
        %s256 = smul.addr %s249, 2
        %s257 = sadd.s32 %s255, %s256
        %s258 = smul.addr %s257, 8
        %s259 = scalar_lea.vmem %s0, %s258
        %p260 = pneg %p62
        %p261 = pneg %p59
        %s262 = sadd.s32 %s25, 1
        %p263 = scmp.lt.s32.totalorder %s23, 1
        %s264 = scalar_select %p263, %s23, 1
        %p265 = scmp.lt.s32.totalorder %s24, 0
        %s266 = scalar_select %p265, %s24, 0
        %p267 = scmp.lt.s32.totalorder %s262, 1
        %s268 = scalar_select %p267, %s262, 1
        %s269 = smul.addr %s266, 2
        %s270 = sadd.s32 %s268, %s269
        %s271 = smul.addr %s264, 2
        %s272 = sadd.s32 %s270, %s271
        %s273 = smul.addr %s272, 8
        %s274 = scalar_lea.vmem %s1, %s273
        %p275 = pneg %p94
        %p276 = pneg %p91
        %p277 = scmp.lt.s32.totalorder %s24, 0
        %s278 = scalar_select %p277, %s24, 0
        %s279 = smul.addr %s278, 2
        %s280 = smul.addr %s279, 8
        %s281 = scalar_lea.vmem %s2, %s280
        %p282 = pneg %p120
        %p283 = pneg %p117
        %p284 = scmp.lt.s32.totalorder %s24, 0
        %s285 = scalar_select %p284, %s24, 0
        %s286 = scalar_lea.vmem %s3, %s285
        %p287 = pneg %p146
        %p288 = pneg %p143
        %p289 = pneg %p176
        %p290 = pneg %p173
        %s291 = sand.u32 %s163, 1
        %s292 = scalar_lea.sflag [#allocation3], %s291
        %s293 = sand.u32 %s163, 1
        %s294 = smul.addr %s293, 8
        %s295 = scalar_lea.vmem [#allocation2], %s294
        %p296 = scmp.lt.s32.totalorder %s23, 1
        %s297 = scalar_select %p296, %s23, 1
        %p298 = scmp.lt.s32.totalorder %s24, 0
        %s299 = scalar_select %p298, %s24, 0
        %p300 = scmp.lt.s32.totalorder %s25, 1
        %s301 = scalar_select %p300, %s25, 1
        %s302 = smul.addr %s299, 2
        %s303 = sadd.s32 %s301, %s302
        %s304 = smul.addr %s297, 2
        %s305 = sadd.s32 %s303, %s304
        %s306 = smul.addr %s305, 8
        %s307 = scalar_lea.vmem %s0, %s306
        %s308 = sadd.s32 %s25, 1
        %p309 = scmp.lt.s32.totalorder %s23, 1
        %s310 = scalar_select %p309, %s23, 1
        %p311 = scmp.lt.s32.totalorder %s24, 0
        %s312 = scalar_select %p311, %s24, 0
        %p313 = scmp.lt.s32.totalorder %s308, 1
        %s314 = scalar_select %p313, %s308, 1
        %s315 = smul.addr %s312, 2
        %s316 = sadd.s32 %s314, %s315
        %s317 = smul.addr %s310, 2
        %s318 = sadd.s32 %s316, %s317
        %s319 = smul.addr %s318, 8
        %s320 = scalar_lea.vmem %s1, %s319
        %s321 = sadd.s32 %s25, 1
        %p322 = scmp.lt.s32.totalorder %s24, 0
        %s323 = scalar_select %p322, %s24, 0
        %s324 = smul.addr %s323, 2
        %s325 = smul.addr %s324, 8
        %s326 = scalar_lea.vmem %s2, %s325
        %p327 = scmp.lt.s32.totalorder %s24, 0
        %s328 = scalar_select %p327, %s24, 0
        %s329 = scalar_lea.vmem %s3, %s328
        %v330 = vld [vmem:[%s307] sm:$0xff]
        %v331 = vld [vmem:[%s320] sm:$0xff]
        %v332 = vld [vmem:[%s326] sm:$0xff]
        %v333 = vld [vmem:[%s326 + $0x8] sm:$0xff]
        %vm336 = vcmask 1046528
        %v337 = vrot.slane %v330, 1
        %v338 = vrot.slane %v331, 1
        %v339 = vsel %vm336, %v337, %v338
        %340 = vrot.lane.b32.xlu0 %v339, 8
        %v341 = vpop.permute.xlu0 %340
        %vm343 = vcmask 64512
        %v344 = vsel %vm343, %v330, %v341
        %v345 = vld [vmem:[%s329] sm:$0x1]
        %v347 = vlaneseq
        %v348 = vshrl.u32 %v347, 7
        %v349 = vsub.s32 0, %v348
        %v350 = vrot.slane %v345, %v349
        %vm352 = vcmask 130048
        %v354 = vsel %vm352, %v344, 0
        %356 = vmatprep.subr.mxu0 0.0
        %357 = vmatpush1.msra.mxu0 %v332
        %358 = vmatprep.subr.mxu0 0.0
        %359 = vmatpush1.msra.mxu0 %v333
        %360 = vmatprep.subr.mxu0 0.0
        %361 = vmatpush1.msra.mxu0 0.0
        %362 = vmatprep.subr.mxu0 0.0
        %363 = vmatpush1.msra.mxu0 0.0
        %364 = vmatprep.subr.mxu0 0.0
        %365 = vmatpush1.msra.mxu0 0.0
        %366 = vmatprep.subr.mxu0 0.0
        %367 = vmatpush1.msra.mxu0 0.0
        %368 = vmatprep.subr.mxu0 0.0
        %369 = vmatpush1.msra.mxu0 0.0
        %370 = vmatprep.subr.mxu0 0.0
        %371 = vmatpush1.msra.mxu0 0.0
        %372 = vmatprep.subr.mxu0 0.0
        %373 = vmatpush1.msra.mxu0 0.0
        %374 = vmatprep.subr.mxu0 0.0
        %375 = vmatpush1.msra.mxu0 0.0
        %376 = vmatprep.subr.mxu0 0.0
        %377 = vmatpush1.msra.mxu0 0.0
        %378 = vmatprep.subr.mxu0 0.0
        %379 = vmatpush1.msra.mxu0 0.0
        %380 = vmatprep.subr.mxu0 0.0
        %381 = vmatpush1.msra.mxu0 0.0
        %382 = vmatprep.subr.mxu0 0.0
        %383 = vmatpush1.msra.mxu0 0.0
        %384 = vmatprep.subr.mxu0 0.0
        %385 = vmatpush1.msra.mxu0 0.0
        %386 = vmatprep.subr.mxu0 0.0
        %387 = vmatpush1.msra.mxu0 0.0
        %388 = vmatprep.subr.mxu0 0.0
        %389 = vmatpush1.msra.mxu0 0.0
        %390 = vmatprep.subr.mxu0 0.0
        %391 = vmatpush1.msra.mxu0 0.0
        %392 = vmatprep.subr.mxu0 0.0
        %393 = vmatpush1.msra.mxu0 0.0
        %394 = vmatprep.subr.mxu0 0.0
        %395 = vmatpush1.msra.mxu0 0.0
        %396 = vmatprep.subr.mxu0 0.0
        %397 = vmatpush1.msra.mxu0 0.0
        %398 = vmatprep.subr.mxu0 0.0
        %399 = vmatpush1.msra.mxu0 0.0
        %400 = vmatprep.subr.mxu0 0.0
        %401 = vmatpush1.msra.mxu0 0.0
        %402 = vmatprep.subr.mxu0 0.0
        %403 = vmatpush1.msra.mxu0 0.0
        %404 = vmatprep.subr.mxu0 0.0
        %405 = vmatpush1.msra.mxu0 0.0
        %406 = vmatprep.subr.mxu0 0.0
        %407 = vmatpush1.msra.mxu0 0.0
        %408 = vmatprep.subr.mxu0 0.0
        %409 = vmatpush1.msra.mxu0 0.0
        %410 = vmatprep.subr.mxu0 0.0
        %411 = vmatpush1.msra.mxu0 0.0
        %412 = vmatprep.subr.mxu0 0.0
        %413 = vmatpush1.msra.mxu0 0.0
        %414 = vmatprep.subr.mxu0 0.0
        %415 = vmatpush1.msra.mxu0 0.0
        %416 = vmatprep.subr.mxu0 0.0
        %417 = vmatpush1.msra.mxu0 0.0
        %418 = vmatprep.subr.mxu0 0.0
        %419 = vmatpush1.msra.mxu0 0.0
        %420 = vmatprep.mubr.f32.mxu0 0.0
        %421 = vmatmul.mubr.f32.gmra.mrb[0].mxu0 %v354
        %v422 = vpop.f32.mrb[0].mxu0
        %v423 = vadd.f32 %v350, %v422
        %v424 = vpop.f32.mrb[0].mxu0
        %425 = vdwg.mxu0
        %426 = vst [vmem:[%s295] sm:$0xff] %v423
        %s427 = sand.u32 %s163, 1
        %s428 = scalar_lea.sflag [#allocation3], %s427
        %s429 = sand.u32 %s163, 1
        %s430 = smul.addr %s429, 8
        %s431 = scalar_lea.vmem [#allocation2], %s430
        // Predicated region
        $region37: #{tpu_custom_call.1} parent=35 // pred_check
          %p432 = pneg %p173
        $region38: #{tpu_custom_call.1} parent=35 // pred_check_branch
          %434 = sbr.rel (%p432) target = $region40
        $region39: #{tpu_custom_call.1} parent=35 // pred_region
          %s436 = ssub.s32 128, 128
          %437 = vsyncadd %s428, %s436
          %s438 = sadd.s32 %s25, %s24
          %s439 = sadd.s32 %s438, %s23
          %s440 = smul.addr %s439, 128
          %s441 = scalar_lea.hbm %s4, %s440
          %s443 = sshll.u32 %s431, 4
          %s444 = int_to_ptr.vmem [resolvable:$true] %s443
          %446 = dma.vmem_to_hbm [thread:$0]  %s444, 128, %s441, %s428
        $region40: #{tpu_custom_call.1} parent=35 // pred_fallthru
          _
      $region36: #{tpu_custom_call.1} parent=5 // pred_fallthru
        _
      %p447 = scmp.le.s32.totalorder 2, %s13
      // Predicated region
      $region41: #{tpu_custom_call.1} parent=5 // pred_check
        %p448 = pneg %p447
      $region42: #{tpu_custom_call.1} parent=5 // pred_check_branch
        %450 = sbr.rel (%p448) target = $region44
      $region43: #{tpu_custom_call.1} parent=5 // pred_region
        %s451 = ssub.s32 %s13, 2
        // Predicated region
        $region45: #{tpu_custom_call.1} parent=43 // pred_check
          %p452 = pneg %p179
        $region46: #{tpu_custom_call.1} parent=43 // pred_check_branch
          %454 = sbr.rel (%p452) target = $region48
        $region47: #{tpu_custom_call.1} parent=43 // pred_region
          %s455 = sand.u32 %s164, 1
          %s456 = scalar_lea.sflag [#allocation3], %s455
          %s457 = sand.u32 %s164, 1
          %s458 = smul.addr %s457, 8
          %s459 = scalar_lea.vmem [#allocation2], %s458
          %460 = dma.done %s456, 128
        $region48: #{tpu_custom_call.1} parent=43 // pred_fallthru
          _
      $region44: #{tpu_custom_call.1} parent=5 // pred_fallthru
        _
    $region6: #{tpu_custom_call.1} parent=1 // loop_footer
      %s17 = sadd.s32 1, %s13
    $region7: #{tpu_custom_call.1} parent=1 // loop_footer_branch
      %12 = sbr.rel target = $region3
    $region8: #{tpu_custom_call.1} parent=1 // loop_exit
      _
    %461 = vsyncpa [#allocation3], 1
    %s462 = scalar_lea.sflag [#allocation3], 1
    %463 = vsyncpa %s462, 1

</llo_original>
